<compile_context>
chip_gen: v7x
topology: tpu7x:2x2x1
jax: 0.10.0
libtpu: 0.0.40
codegen_flags: <defaults>
</compile_context>

<pallas_src>
import math
from functools import partial

import jax
import jax.numpy as jnp
from jax.experimental import pallas as pl
from jax.experimental.pallas import tpu as pltpu

DIM = 32          # embedding dim
LINEAR_DIM = 64   # MLP hidden dim
HEADS = 8         # attention params exist in the module, but its output is discarded
LAYERS = 2
LN_EPS = 1e-5     # torch.nn.LayerNorm default

# rows of the packed f32 vector blob (per layer)
_G1, _BE1, _B1, _B2, _G2, _BE2 = 0, 1, 2, 3, 4, 5
_VEC_ROWS = 8     # padded to a sublane-friendly row count


def _layernorm(x, gamma, beta):
    mu = jnp.mean(x, axis=-1, keepdims=True)
    xc = x - mu
    var = jnp.mean(xc * xc, axis=-1, keepdims=True)
    return xc * jax.lax.rsqrt(var + LN_EPS) * gamma + beta


def _gelu(x):
    # tanh-approximate GELU (native EUP tanh). See header note re: erf form.
    c = math.sqrt(2.0 / math.pi)
    return 0.5 * x * (1.0 + jnp.tanh(c * (x + 0.044715 * x * x * x)))


def encoder_kernel(x_ref, w_ref, v_ref, out_ref, *, layers, dim):
    """All transformer blocks fused; the activation never leaves VMEM/vregs.

    x_ref : (TM, D) f32 row tile.
    w_ref : (L, D+H, H) bf16 — rows [0:D] = w1 (D,H); rows [D:] = w2 (H,D)
            zero-padded to H columns.
    v_ref : (L, 8, H) f32 — rows g1, be1, b1, b2, g2, be2 (zero-padded lanes).
    """
    h = x_ref[...].astype(jnp.float32)                      # (TM, D) f32
    for l in range(layers):                                 # static unroll (L tiny)
        w1 = w_ref[l, :dim, :]                              # (D, H) bf16
        w2 = w_ref[l, dim:, :dim]                           # (H, D) bf16
        g1, be1 = v_ref[l, _G1:_G1 + 1, :dim], v_ref[l, _BE1:_BE1 + 1, :dim]
        b1 = v_ref[l, _B1:_B1 + 1, :]                       # (1, H)
        b2 = v_ref[l, _B2:_B2 + 1, :dim]                    # (1, D)
        g2, be2 = v_ref[l, _G2:_G2 + 1, :dim], v_ref[l, _BE2:_BE2 + 1, :dim]

        # reference: out = dropout(x) + x == 2x at eval; then norm_1
        r = _layernorm(2.0 * h, g1, be1)
        # MLP: bf16 operands on the MXU, f32 accumulation, f32 elementwise math.
        m = jnp.dot(r.astype(jnp.bfloat16), w1,
                    preferred_element_type=jnp.float32) + b1
        m = _gelu(m)
        m = jnp.dot(m.astype(jnp.bfloat16), w2,
                    preferred_element_type=jnp.float32) + b2
        # reference: out = mlp(out) + x ; norm_2
        h = _layernorm(m + h, g2, be2)
    out_ref[...] = h.astype(out_ref.dtype)


def transformer_encoder_fwd(x, wblob, vblob):
    """x: (B, S, D) float32.  wblob/vblob: packed per-layer params (see pack_params)."""
    B, S, D = x.shape
    N = B * S
    layers = wblob.shape[0]
    x2 = x.reshape(N, D)                     # flatten rows outside the kernel (free)

    # Row tile: >=512 rows at scale amortizes the ~0.35us/grid-step overhead
    # (~85% of HBM roofline in the memory-bound regime); at small N split in two
    # so v7x's second TensorCore isn't idle.  VMEM budget (v7x 64 MiB physical /
    # 32 MiB scoped): 2 bufs x (in+out) x TM x D x 4B + ~26 KB weights is well
    # under budget even at TM=2048, so no vmem_limit_bytes override is needed.
    if N >= 1024:
        tm = 512
    else:
        tm = max(8, ((N // 2 + 7) // 8) * 8)
    grid = (pl.cdiv(N, tm),)

    resident = pl.BlockSpec(memory_space=pltpu.MemorySpace.VMEM)  # whole-array, VMEM-resident
    # NOTE(perf-review): at large N this kernel is HBM-bound; shipping x2/out as
    # bf16 would halve activation traffic but adds ~4e-3 relative error, outside
    # the 2e-3 check below, so activations stay f32 at the boundary here.
    # TODO(synk): lane-dense repack ((N,32)->(N/4,128) + 4x block-diagonal weights
    # and segmented LayerNorm) per the review is the next lever at scale; not
    # worthwhile at B*S=16.
    out = pl.pallas_call(
        partial(encoder_kernel, layers=layers, dim=D),
        out_shape=jax.ShapeDtypeStruct((N, D), jnp.float32),
        grid=grid,
        in_specs=[pl.BlockSpec((tm, D), lambda i: (i, 0)), resident, resident],
        out_specs=pl.BlockSpec((tm, D), lambda i: (i, 0)),
        compiler_params=pltpu.CompilerParams(
            dimension_semantics=("parallel",)),
    )(x2, wblob, vblob)
    return out.reshape(B, S, D)


transformer_encoder = jax.jit(transformer_encoder_fwd)


def init_params(key, dim, linear_dim, layers):
    params = []
    for _ in range(layers):
        key, k0, k1, k2, k3, k4 = jax.random.split(key, 6)
        params.append({
            # Attention weights are part of the module's state, but the reference
            # forward discards self.mhsa(x) -- they intentionally never reach the kernel.
            'w_qkv': 0.02 * jax.random.normal(k0, (dim, 3 * dim), jnp.float32),
            'w_o':   0.02 * jax.random.normal(k1, (dim, dim), jnp.float32),
            'b_o':   jnp.zeros((1, dim), jnp.float32),
            'g1':    jnp.ones((1, dim), jnp.float32),
            'be1':   jnp.zeros((1, dim), jnp.float32),
            'w1':    0.02 * jax.random.normal(k2, (dim, linear_dim), jnp.float32),
            'b1':    0.02 * jax.random.normal(k3, (1, linear_dim), jnp.float32),
            'w2':    0.02 * jax.random.normal(k4, (linear_dim, dim), jnp.float32),
            'b2':    jnp.zeros((1, dim), jnp.float32),
            'g2':    jnp.ones((1, dim), jnp.float32),
            'be2':   jnp.zeros((1, dim), jnp.float32),
        })
    return params


def pack_params(params):
    """Pack live per-layer weights into two blobs (one DMA each).

    wblob: (L, DIM+LINEAR_DIM, LINEAR_DIM) bf16 — w1 in rows [0:DIM],
           w2 (zero-padded to LINEAR_DIM columns) in rows [DIM:].
    vblob: (L, 8, LINEAR_DIM) f32 — g1, be1, b1, b2, g2, be2 (lanes zero-padded),
           rows 6-7 are padding.
    """
    w_list, v_list = [], []
    for p in params:
        w2p = jnp.pad(p['w2'], ((0, 0), (0, LINEAR_DIM - DIM)))
        w_list.append(jnp.concatenate([p['w1'], w2p], axis=0))      # (D+H, H)
        vec = jnp.zeros((_VEC_ROWS, LINEAR_DIM), jnp.float32)
        vec = vec.at[_G1, :DIM].set(p['g1'][0])
        vec = vec.at[_BE1, :DIM].set(p['be1'][0])
        vec = vec.at[_B1, :].set(p['b1'][0])
        vec = vec.at[_B2, :DIM].set(p['b2'][0])
        vec = vec.at[_G2, :DIM].set(p['g2'][0])
        vec = vec.at[_BE2, :DIM].set(p['be2'][0])
        v_list.append(vec)
    wblob = jnp.stack(w_list).astype(jnp.bfloat16)
    vblob = jnp.stack(v_list)
    return wblob, vblob


def _block_ref(x, p):
    """Pure-JAX f32 reference of TransformerBlock.forward (eval mode)."""
    def ln(h, g, b):
        mu = h.mean(-1, keepdims=True)
        var = ((h - mu) ** 2).mean(-1, keepdims=True)
        return (h - mu) / jnp.sqrt(var + LN_EPS) * g + b
    h = x + x                                  # dropout(x) + x (attention discarded)
    h = ln(h, p['g1'], p['be1'])
    m = _gelu(h @ p['w1'] + p['b1'])
    m = m @ p['w2'] + p['b2']
    h = m + x
    return ln(h, p['g2'], p['be2'])


if __name__ == "__main__":
    key = jax.random.PRNGKey(0)
    kx, kp = jax.random.split(key)
    B, S = 2, 8
    x = jax.random.normal(kx, (B, S, DIM), jnp.float32)
    params = init_params(kp, DIM, LINEAR_DIM, LAYERS)
    wblob, vblob = pack_params(params)

    out = transformer_encoder(x, wblob, vblob)
    jax.block_until_ready(out)

    # correctness vs. a pure-f32 JAX reference of the full stack.  Tolerance 2e-3
    # absorbs the bf16 MXU-operand rounding (estimated max error < 1e-3 at these
    # weight/activation scales); everything else is computed in f32.
    ref = x
    for p in params:
        ref = _block_ref(ref, p)
    assert jnp.allclose(out, ref, rtol=2e-3, atol=2e-3), "kernel mismatch vs reference"

    print("KERNEL_OK")
</pallas_src>

<mosaic_0001>
module attributes {stable_mosaic.version = 11 : i64} {
  func.func @encoder_kernel(%arg0: i32, %arg1: memref<8x32xf32, #tpu.memory_space<vmem>>, %arg2: memref<2x96x64xbf16, #tpu.memory_space<vmem>>, %arg3: memref<2x8x64xf32, #tpu.memory_space<vmem>>, %arg4: memref<8x32xf32, #tpu.memory_space<vmem>>) attributes {dimension_semantics = [#tpu.dimension_semantics<parallel>], iteration_bounds = array<i64: 2>, scalar_prefetch = 0 : i64, scratch_operands = 0 : i64, tpu.core_type = #tpu.core_type<tc>, window_params = [{transform_indices = @transform_0, window_bounds = array<i64: 8, 32>}, {pipeline_mode = #tpu.pipeline_mode<synchronous>, transform_indices = @transform_1, window_bounds = array<i64: 2, 96, 64>}, {pipeline_mode = #tpu.pipeline_mode<synchronous>, transform_indices = @transform_2, window_bounds = array<i64: 2, 8, 64>}, {transform_indices = @transform_3, window_bounds = array<i64: 8, 32>}]} {
    %c0 = arith.constant 0 : index
    %c0_0 = arith.constant 0 : index
    %0 = vector.load %arg1[%c0, %c0_0] : memref<8x32xf32, #tpu.memory_space<vmem>>, vector<8x32xf32>
    %c0_1 = arith.constant 0 : index
    %c0_2 = arith.constant 0 : index
    %c0_3 = arith.constant 0 : index
    %1 = vector.load %arg2[%c0_1, %c0_2, %c0_3] : memref<2x96x64xbf16, #tpu.memory_space<vmem>>, vector<1x32x64xbf16>
    %2 = vector.shape_cast %1 : vector<1x32x64xbf16> to vector<32x64xbf16>
    %c0_4 = arith.constant 0 : index
    %c32 = arith.constant 32 : index
    %c0_5 = arith.constant 0 : index
    %3 = vector.load %arg2[%c0_4, %c32, %c0_5] : memref<2x96x64xbf16, #tpu.memory_space<vmem>>, vector<1x64x32xbf16>
    %4 = vector.shape_cast %3 : vector<1x64x32xbf16> to vector<64x32xbf16>
    %c0_6 = arith.constant 0 : index
    %c0_7 = arith.constant 0 : index
    %c0_8 = arith.constant 0 : index
    %5 = vector.load %arg3[%c0_6, %c0_7, %c0_8] : memref<2x8x64xf32, #tpu.memory_space<vmem>>, vector<1x1x32xf32>
    %6 = vector.shape_cast %5 : vector<1x1x32xf32> to vector<1x32xf32>
    %c0_9 = arith.constant 0 : index
    %c1 = arith.constant 1 : index
    %c0_10 = arith.constant 0 : index
    %7 = vector.load %arg3[%c0_9, %c1, %c0_10] : memref<2x8x64xf32, #tpu.memory_space<vmem>>, vector<1x1x32xf32>
    %8 = vector.shape_cast %7 : vector<1x1x32xf32> to vector<1x32xf32>
    %c0_11 = arith.constant 0 : index
    %c2 = arith.constant 2 : index
    %c0_12 = arith.constant 0 : index
    %9 = vector.load %arg3[%c0_11, %c2, %c0_12] : memref<2x8x64xf32, #tpu.memory_space<vmem>>, vector<1x1x64xf32>
    %10 = vector.shape_cast %9 : vector<1x1x64xf32> to vector<1x64xf32>
    %c0_13 = arith.constant 0 : index
    %c3 = arith.constant 3 : index
    %c0_14 = arith.constant 0 : index
    %11 = vector.load %arg3[%c0_13, %c3, %c0_14] : memref<2x8x64xf32, #tpu.memory_space<vmem>>, vector<1x1x32xf32>
    %12 = vector.shape_cast %11 : vector<1x1x32xf32> to vector<1x32xf32>
    %c0_15 = arith.constant 0 : index
    %c4 = arith.constant 4 : index
    %c0_16 = arith.constant 0 : index
    %13 = vector.load %arg3[%c0_15, %c4, %c0_16] : memref<2x8x64xf32, #tpu.memory_space<vmem>>, vector<1x1x32xf32>
    %14 = vector.shape_cast %13 : vector<1x1x32xf32> to vector<1x32xf32>
    %c0_17 = arith.constant 0 : index
    %c5 = arith.constant 5 : index
    %c0_18 = arith.constant 0 : index
    %15 = vector.load %arg3[%c0_17, %c5, %c0_18] : memref<2x8x64xf32, #tpu.memory_space<vmem>>, vector<1x1x32xf32>
    %16 = vector.shape_cast %15 : vector<1x1x32xf32> to vector<1x32xf32>
    %cst = arith.constant 2.000000e+00 : f32
    %17 = vector.broadcast %cst : f32 to vector<8x32xf32>
    %18 = arith.mulf %17, %0 : vector<8x32xf32>
    %cst_19 = arith.constant dense<0.000000e+00> : vector<8xf32>
    %19 = vector.multi_reduction <add>, %18, %cst_19 [1] : vector<8x32xf32> to vector<8xf32>
    %20 = vector.shape_cast %19 : vector<8xf32> to vector<8x1xf32>
    %cst_20 = arith.constant 3.200000e+01 : f32
    %21 = vector.broadcast %cst_20 : f32 to vector<8x1xf32>
    %22 = arith.divf %20, %21 : vector<8x1xf32>
    %23 = vector.broadcast %22 : vector<8x1xf32> to vector<8x32xf32>
    %24 = arith.subf %18, %23 : vector<8x32xf32>
    %25 = arith.mulf %24, %24 : vector<8x32xf32>
    %cst_21 = arith.constant dense<0.000000e+00> : vector<8xf32>
    %26 = vector.multi_reduction <add>, %25, %cst_21 [1] : vector<8x32xf32> to vector<8xf32>
    %27 = vector.shape_cast %26 : vector<8xf32> to vector<8x1xf32>
    %cst_22 = arith.constant 3.200000e+01 : f32
    %28 = vector.broadcast %cst_22 : f32 to vector<8x1xf32>
    %29 = arith.divf %27, %28 : vector<8x1xf32>
    %cst_23 = arith.constant 9.99999974E-6 : f32
    %30 = vector.broadcast %cst_23 : f32 to vector<8x1xf32>
    %31 = arith.addf %29, %30 : vector<8x1xf32>
    %32 = math.rsqrt %31 : vector<8x1xf32>
    %33 = vector.broadcast %32 : vector<8x1xf32> to vector<8x32xf32>
    %34 = arith.mulf %24, %33 : vector<8x32xf32>
    %35 = vector.broadcast %6 : vector<1x32xf32> to vector<8x32xf32>
    %36 = arith.mulf %34, %35 : vector<8x32xf32>
    %37 = vector.broadcast %8 : vector<1x32xf32> to vector<8x32xf32>
    %38 = arith.addf %36, %37 : vector<8x32xf32>
    %39 = arith.truncf %38 : vector<8x32xf32> to vector<8x32xbf16>
    %cst_24 = arith.constant dense<0.000000e+00> : vector<8x64xf32>
    %40 = tpu.matmul %39, %2, %cst_24 {dimension_numbers = #tpu.dot_dimension_numbers<[1], [0], [0], [1], [0, 0, 1, 1], [], []>} : vector<8x32xbf16>, vector<32x64xbf16>, vector<8x64xf32> -> vector<8x64xf32>
    %41 = vector.broadcast %10 : vector<1x64xf32> to vector<8x64xf32>
    %42 = arith.addf %40, %41 : vector<8x64xf32>
    %cst_25 = arith.constant 5.000000e-01 : f32
    %43 = vector.broadcast %cst_25 : f32 to vector<8x64xf32>
    %44 = arith.mulf %43, %42 : vector<8x64xf32>
    %cst_26 = arith.constant 4.471500e-02 : f32
    %45 = vector.broadcast %cst_26 : f32 to vector<8x64xf32>
    %46 = arith.mulf %45, %42 : vector<8x64xf32>
    %47 = arith.mulf %46, %42 : vector<8x64xf32>
    %48 = arith.mulf %47, %42 : vector<8x64xf32>
    %49 = arith.addf %42, %48 : vector<8x64xf32>
    %cst_27 = arith.constant 0.797884583 : f32
    %50 = vector.broadcast %cst_27 : f32 to vector<8x64xf32>
    %51 = arith.mulf %50, %49 : vector<8x64xf32>
    %52 = math.tanh %51 : vector<8x64xf32>
    %cst_28 = arith.constant 1.000000e+00 : f32
    %53 = vector.broadcast %cst_28 : f32 to vector<8x64xf32>
    %54 = arith.addf %53, %52 : vector<8x64xf32>
    %55 = arith.mulf %44, %54 : vector<8x64xf32>
    %56 = arith.truncf %55 : vector<8x64xf32> to vector<8x64xbf16>
    %cst_29 = arith.constant dense<0.000000e+00> : vector<8x32xf32>
    %57 = tpu.matmul %56, %4, %cst_29 {dimension_numbers = #tpu.dot_dimension_numbers<[1], [0], [0], [1], [0, 0, 1, 1], [], []>} : vector<8x64xbf16>, vector<64x32xbf16>, vector<8x32xf32> -> vector<8x32xf32>
    %58 = vector.broadcast %12 : vector<1x32xf32> to vector<8x32xf32>
    %59 = arith.addf %57, %58 : vector<8x32xf32>
    %60 = arith.addf %59, %0 : vector<8x32xf32>
    %cst_30 = arith.constant dense<0.000000e+00> : vector<8xf32>
    %61 = vector.multi_reduction <add>, %60, %cst_30 [1] : vector<8x32xf32> to vector<8xf32>
    %62 = vector.shape_cast %61 : vector<8xf32> to vector<8x1xf32>
    %cst_31 = arith.constant 3.200000e+01 : f32
    %63 = vector.broadcast %cst_31 : f32 to vector<8x1xf32>
    %64 = arith.divf %62, %63 : vector<8x1xf32>
    %65 = vector.broadcast %64 : vector<8x1xf32> to vector<8x32xf32>
    %66 = arith.subf %60, %65 : vector<8x32xf32>
    %67 = arith.mulf %66, %66 : vector<8x32xf32>
    %cst_32 = arith.constant dense<0.000000e+00> : vector<8xf32>
    %68 = vector.multi_reduction <add>, %67, %cst_32 [1] : vector<8x32xf32> to vector<8xf32>
    %69 = vector.shape_cast %68 : vector<8xf32> to vector<8x1xf32>
    %cst_33 = arith.constant 3.200000e+01 : f32
    %70 = vector.broadcast %cst_33 : f32 to vector<8x1xf32>
    %71 = arith.divf %69, %70 : vector<8x1xf32>
    %cst_34 = arith.constant 9.99999974E-6 : f32
    %72 = vector.broadcast %cst_34 : f32 to vector<8x1xf32>
    %73 = arith.addf %71, %72 : vector<8x1xf32>
    %74 = math.rsqrt %73 : vector<8x1xf32>
    %75 = vector.broadcast %74 : vector<8x1xf32> to vector<8x32xf32>
    %76 = arith.mulf %66, %75 : vector<8x32xf32>
    %77 = vector.broadcast %14 : vector<1x32xf32> to vector<8x32xf32>
    %78 = arith.mulf %76, %77 : vector<8x32xf32>
    %79 = vector.broadcast %16 : vector<1x32xf32> to vector<8x32xf32>
    %80 = arith.addf %78, %79 : vector<8x32xf32>
    %c1_35 = arith.constant 1 : index
    %c0_36 = arith.constant 0 : index
    %c0_37 = arith.constant 0 : index
    %81 = vector.load %arg2[%c1_35, %c0_36, %c0_37] : memref<2x96x64xbf16, #tpu.memory_space<vmem>>, vector<1x32x64xbf16>
    %82 = vector.shape_cast %81 : vector<1x32x64xbf16> to vector<32x64xbf16>
    %c1_38 = arith.constant 1 : index
    %c32_39 = arith.constant 32 : index
    %c0_40 = arith.constant 0 : index
    %83 = vector.load %arg2[%c1_38, %c32_39, %c0_40] : memref<2x96x64xbf16, #tpu.memory_space<vmem>>, vector<1x64x32xbf16>
    %84 = vector.shape_cast %83 : vector<1x64x32xbf16> to vector<64x32xbf16>
    %c1_41 = arith.constant 1 : index
    %c0_42 = arith.constant 0 : index
    %c0_43 = arith.constant 0 : index
    %85 = vector.load %arg3[%c1_41, %c0_42, %c0_43] : memref<2x8x64xf32, #tpu.memory_space<vmem>>, vector<1x1x32xf32>
    %86 = vector.shape_cast %85 : vector<1x1x32xf32> to vector<1x32xf32>
    %c1_44 = arith.constant 1 : index
    %c1_45 = arith.constant 1 : index
    %c0_46 = arith.constant 0 : index
    %87 = vector.load %arg3[%c1_44, %c1_45, %c0_46] : memref<2x8x64xf32, #tpu.memory_space<vmem>>, vector<1x1x32xf32>
    %88 = vector.shape_cast %87 : vector<1x1x32xf32> to vector<1x32xf32>
    %c1_47 = arith.constant 1 : index
    %c2_48 = arith.constant 2 : index
    %c0_49 = arith.constant 0 : index
    %89 = vector.load %arg3[%c1_47, %c2_48, %c0_49] : memref<2x8x64xf32, #tpu.memory_space<vmem>>, vector<1x1x64xf32>
    %90 = vector.shape_cast %89 : vector<1x1x64xf32> to vector<1x64xf32>
    %c1_50 = arith.constant 1 : index
    %c3_51 = arith.constant 3 : index
    %c0_52 = arith.constant 0 : index
    %91 = vector.load %arg3[%c1_50, %c3_51, %c0_52] : memref<2x8x64xf32, #tpu.memory_space<vmem>>, vector<1x1x32xf32>
    %92 = vector.shape_cast %91 : vector<1x1x32xf32> to vector<1x32xf32>
    %c1_53 = arith.constant 1 : index
    %c4_54 = arith.constant 4 : index
    %c0_55 = arith.constant 0 : index
    %93 = vector.load %arg3[%c1_53, %c4_54, %c0_55] : memref<2x8x64xf32, #tpu.memory_space<vmem>>, vector<1x1x32xf32>
    %94 = vector.shape_cast %93 : vector<1x1x32xf32> to vector<1x32xf32>
    %c1_56 = arith.constant 1 : index
    %c5_57 = arith.constant 5 : index
    %c0_58 = arith.constant 0 : index
    %95 = vector.load %arg3[%c1_56, %c5_57, %c0_58] : memref<2x8x64xf32, #tpu.memory_space<vmem>>, vector<1x1x32xf32>
    %96 = vector.shape_cast %95 : vector<1x1x32xf32> to vector<1x32xf32>
    %cst_59 = arith.constant 2.000000e+00 : f32
    %97 = vector.broadcast %cst_59 : f32 to vector<8x32xf32>
    %98 = arith.mulf %97, %80 : vector<8x32xf32>
    %cst_60 = arith.constant dense<0.000000e+00> : vector<8xf32>
    %99 = vector.multi_reduction <add>, %98, %cst_60 [1] : vector<8x32xf32> to vector<8xf32>
    %100 = vector.shape_cast %99 : vector<8xf32> to vector<8x1xf32>
    %cst_61 = arith.constant 3.200000e+01 : f32
    %101 = vector.broadcast %cst_61 : f32 to vector<8x1xf32>
    %102 = arith.divf %100, %101 : vector<8x1xf32>
    %103 = vector.broadcast %102 : vector<8x1xf32> to vector<8x32xf32>
    %104 = arith.subf %98, %103 : vector<8x32xf32>
    %105 = arith.mulf %104, %104 : vector<8x32xf32>
    %cst_62 = arith.constant dense<0.000000e+00> : vector<8xf32>
    %106 = vector.multi_reduction <add>, %105, %cst_62 [1] : vector<8x32xf32> to vector<8xf32>
    %107 = vector.shape_cast %106 : vector<8xf32> to vector<8x1xf32>
    %cst_63 = arith.constant 3.200000e+01 : f32
    %108 = vector.broadcast %cst_63 : f32 to vector<8x1xf32>
    %109 = arith.divf %107, %108 : vector<8x1xf32>
    %cst_64 = arith.constant 9.99999974E-6 : f32
    %110 = vector.broadcast %cst_64 : f32 to vector<8x1xf32>
    %111 = arith.addf %109, %110 : vector<8x1xf32>
    %112 = math.rsqrt %111 : vector<8x1xf32>
    %113 = vector.broadcast %112 : vector<8x1xf32> to vector<8x32xf32>
    %114 = arith.mulf %104, %113 : vector<8x32xf32>
    %115 = vector.broadcast %86 : vector<1x32xf32> to vector<8x32xf32>
    %116 = arith.mulf %114, %115 : vector<8x32xf32>
    %117 = vector.broadcast %88 : vector<1x32xf32> to vector<8x32xf32>
    %118 = arith.addf %116, %117 : vector<8x32xf32>
    %119 = arith.truncf %118 : vector<8x32xf32> to vector<8x32xbf16>
    %cst_65 = arith.constant dense<0.000000e+00> : vector<8x64xf32>
    %120 = tpu.matmul %119, %82, %cst_65 {dimension_numbers = #tpu.dot_dimension_numbers<[1], [0], [0], [1], [0, 0, 1, 1], [], []>} : vector<8x32xbf16>, vector<32x64xbf16>, vector<8x64xf32> -> vector<8x64xf32>
    %121 = vector.broadcast %90 : vector<1x64xf32> to vector<8x64xf32>
    %122 = arith.addf %120, %121 : vector<8x64xf32>
    %cst_66 = arith.constant 5.000000e-01 : f32
    %123 = vector.broadcast %cst_66 : f32 to vector<8x64xf32>
    %124 = arith.mulf %123, %122 : vector<8x64xf32>
    %cst_67 = arith.constant 4.471500e-02 : f32
    %125 = vector.broadcast %cst_67 : f32 to vector<8x64xf32>
    %126 = arith.mulf %125, %122 : vector<8x64xf32>
    %127 = arith.mulf %126, %122 : vector<8x64xf32>
    %128 = arith.mulf %127, %122 : vector<8x64xf32>
    %129 = arith.addf %122, %128 : vector<8x64xf32>
    %cst_68 = arith.constant 0.797884583 : f32
    %130 = vector.broadcast %cst_68 : f32 to vector<8x64xf32>
    %131 = arith.mulf %130, %129 : vector<8x64xf32>
    %132 = math.tanh %131 : vector<8x64xf32>
    %cst_69 = arith.constant 1.000000e+00 : f32
    %133 = vector.broadcast %cst_69 : f32 to vector<8x64xf32>
    %134 = arith.addf %133, %132 : vector<8x64xf32>
    %135 = arith.mulf %124, %134 : vector<8x64xf32>
    %136 = arith.truncf %135 : vector<8x64xf32> to vector<8x64xbf16>
    %cst_70 = arith.constant dense<0.000000e+00> : vector<8x32xf32>
    %137 = tpu.matmul %136, %84, %cst_70 {dimension_numbers = #tpu.dot_dimension_numbers<[1], [0], [0], [1], [0, 0, 1, 1], [], []>} : vector<8x64xbf16>, vector<64x32xbf16>, vector<8x32xf32> -> vector<8x32xf32>
    %138 = vector.broadcast %92 : vector<1x32xf32> to vector<8x32xf32>
    %139 = arith.addf %137, %138 : vector<8x32xf32>
    %140 = arith.addf %139, %80 : vector<8x32xf32>
    %cst_71 = arith.constant dense<0.000000e+00> : vector<8xf32>
    %141 = vector.multi_reduction <add>, %140, %cst_71 [1] : vector<8x32xf32> to vector<8xf32>
    %142 = vector.shape_cast %141 : vector<8xf32> to vector<8x1xf32>
    %cst_72 = arith.constant 3.200000e+01 : f32
    %143 = vector.broadcast %cst_72 : f32 to vector<8x1xf32>
    %144 = arith.divf %142, %143 : vector<8x1xf32>
    %145 = vector.broadcast %144 : vector<8x1xf32> to vector<8x32xf32>
    %146 = arith.subf %140, %145 : vector<8x32xf32>
    %147 = arith.mulf %146, %146 : vector<8x32xf32>
    %cst_73 = arith.constant dense<0.000000e+00> : vector<8xf32>
    %148 = vector.multi_reduction <add>, %147, %cst_73 [1] : vector<8x32xf32> to vector<8xf32>
    %149 = vector.shape_cast %148 : vector<8xf32> to vector<8x1xf32>
    %cst_74 = arith.constant 3.200000e+01 : f32
    %150 = vector.broadcast %cst_74 : f32 to vector<8x1xf32>
    %151 = arith.divf %149, %150 : vector<8x1xf32>
    %cst_75 = arith.constant 9.99999974E-6 : f32
    %152 = vector.broadcast %cst_75 : f32 to vector<8x1xf32>
    %153 = arith.addf %151, %152 : vector<8x1xf32>
    %154 = math.rsqrt %153 : vector<8x1xf32>
    %155 = vector.broadcast %154 : vector<8x1xf32> to vector<8x32xf32>
    %156 = arith.mulf %146, %155 : vector<8x32xf32>
    %157 = vector.broadcast %94 : vector<1x32xf32> to vector<8x32xf32>
    %158 = arith.mulf %156, %157 : vector<8x32xf32>
    %159 = vector.broadcast %96 : vector<1x32xf32> to vector<8x32xf32>
    %160 = arith.addf %158, %159 : vector<8x32xf32>
    %c0_76 = arith.constant 0 : index
    %c0_77 = arith.constant 0 : index
    %161 = vector.load %arg4[%c0_76, %c0_77] : memref<8x32xf32, #tpu.memory_space<vmem>>, vector<8x32xf32>
    tpu.vector_store %arg4[%c0_76, %c0_77], %160 {strides = array<i32>} : memref<8x32xf32, #tpu.memory_space<vmem>>, vector<8x32xf32>,
    return
  }
  func.func @transform_0(%arg0: i32) -> (i32, i32) {
    %c0_i32 = arith.constant 0 : i32
    %c0_i32_0 = arith.constant 0 : i32
    return %arg0, %c0_i32 : i32, i32
  }
  func.func @transform_1(%arg0: i32) -> (i32, i32, i32) {
    %c0_i32 = arith.constant 0 : i32
    %c0_i32_0 = arith.constant 0 : i32
    %c0_i32_1 = arith.constant 0 : i32
    %c0_i32_2 = arith.constant 0 : i32
    return %c0_i32, %c0_i32_0, %c0_i32_1 : i32, i32, i32
  }
  func.func @transform_2(%arg0: i32) -> (i32, i32, i32) {
    %c0_i32 = arith.constant 0 : i32
    %c0_i32_0 = arith.constant 0 : i32
    %c0_i32_1 = arith.constant 0 : i32
    %c0_i32_2 = arith.constant 0 : i32
    return %c0_i32, %c0_i32_0, %c0_i32_1 : i32, i32, i32
  }
  func.func @transform_3(%arg0: i32) -> (i32, i32) {
    %c0_i32 = arith.constant 0 : i32
    %c0_i32_0 = arith.constant 0 : i32
    return %arg0, %c0_i32 : i32, i32
  }
}

</mosaic_0001>

<llo_original>
// kernel: transformer_encoder_fwd.1
$region0: #{transformer_encoder_fwd.1}
  #allocation0 [shape = 'u32[]', space=smem, size = 0x4, offset = 0x4, fixed_abs, tag = 'smem constant byte address 0x4 - core index']
  #allocation1 [shape = 'u32[144,128]{1,0:T(1,128)}', space=vmem, size = 0x12000, scoped, tag = 'internal scratch']
  %s0 = inlined_call_operand.vmem [shape: f32[16,32], index: 0, kind: input, shape index: {}]
  %s1 = inlined_call_operand.vmem [shape: bf16[2,96,64], index: 1, kind: input, shape index: {}]
  %s2 = inlined_call_operand.vmem [shape: f32[2,8,64], index: 2, kind: input, shape index: {}]
  %s3 = inlined_call_operand.hbm [shape: f32[16,32], index: 3, kind: output, shape index: {}]
  %s4 = sld [smem:[#allocation0]]
  $region45: #{transformer_encoder_fwd.1} parent=0
    _
  %s6 = ssub.s32 1, %s4
  %s7 = scalar_select 0, %s6, %s4
  $region1: #{transformer_encoder_fwd.1} parent=0
    #allocation2 [shape = 'u8[8192]{0}', space=vmem, size = 0x2000, scoped, tag = 'output window, operand 0']
    #allocation3 [shape = 's32[2]{0}', space=sflag, size = 0x8, scoped, tag = 'scoped memory for transformer_encoder_fwd.1']
    %8 = vsyncpa [#allocation3], 0
    %s9 = scalar_lea.sflag [#allocation3], 1
    %10 = vsyncpa %s9, 0
    loop: start=0, step=1, limit=4
    $region2: #{transformer_encoder_fwd.1} parent=1 // loop_pre_header
      _
    $region3: #{transformer_encoder_fwd.1} parent=1 // loop_header
      %s12 = sphi 0, %s16
      %p13 = scmp.ge.s32.totalorder %s12, 4
      %s22 = sphi 0, %s24
      %s25 = sphi 0, %s22
      %s26 = sphi 0, %s25
      %s42 = sphi 0, %s26
      %s46 = sphi 0, %s46
      %s48 = sphi 0, %s46
      %s49 = sphi 0, %s48
      %s63 = sphi 0, %s49
      %s67 = sphi 0, %s67
      %s69 = sphi 0, %s67
      %s70 = sphi 0, %s69
      %s84 = sphi 0, %s70
      %s90 = sphi 0, %s92
      %s93 = sphi 0, %s90
      %s94 = sphi 0, %s93
      %s110 = sphi 0, %s94
    $region4: #{transformer_encoder_fwd.1} parent=1 // loop_header_branch
      %15 = sbr.rel (%p13) target = $region8
    $region5: #{transformer_encoder_fwd.1} parent=1 // loop_body
      %s17 = ssub.s32 %s12, 1
      %s18 = ssub.s32 %s12, 2
      %s19 = sadd.s32 %s12, 1
      %s20 = ssub.s32 %s12, %s19
      %p21 = scmp.eq.s32.totalorder %s20, 0
      %s23 = sadd.s32 %s22, 1
      %s24 = scalar_select %p21, %s22, %s23
      %p27 = pneg %p21
      %p28 = scmp.eq.s32.totalorder %s12, 1
      %p29 = por %p27, %p28
      %p30 = scmp.ne.s32.totalorder %s22, %s25
      %p31 = scmp.eq.s32.totalorder %s12, 0
      %p32 = por %p30, %p31
      %p33 = scmp.ne.s32.totalorder %s22, %s25
      %p34 = scmp.eq.s32.totalorder %s17, 1
      %p35 = por %p33, %p34
      %p36 = scmp.ne.s32.totalorder %s25, %s26
      %p37 = scmp.eq.s32.totalorder %s17, 0
      %p38 = por %p36, %p37
      %p39 = scmp.ne.s32.totalorder %s25, %s26
      %p40 = scmp.eq.s32.totalorder %s18, 1
      %p41 = por %p39, %p40
      %p43 = scmp.ne.s32.totalorder %s26, %s42
      %p44 = scmp.eq.s32.totalorder %s18, 0
      %p45 = por %p43, %p44
      %s47 = sadd.s32 %s46, 1
      %p50 = scmp.eq.s32.totalorder %s12, 1
      %p51 = scmp.ne.s32.totalorder %s46, %s48
      %p52 = scmp.eq.s32.totalorder %s12, 0
      %p53 = por %p51, %p52
      %p54 = scmp.ne.s32.totalorder %s46, %s48
      %p55 = scmp.eq.s32.totalorder %s17, 1
      %p56 = por %p54, %p55
      %p57 = scmp.ne.s32.totalorder %s48, %s49
      %p58 = scmp.eq.s32.totalorder %s17, 0
      %p59 = por %p57, %p58
      %p60 = scmp.ne.s32.totalorder %s48, %s49
      %p61 = scmp.eq.s32.totalorder %s18, 1
      %p62 = por %p60, %p61
      %p64 = scmp.ne.s32.totalorder %s49, %s63
      %p65 = scmp.eq.s32.totalorder %s18, 0
      %p66 = por %p64, %p65
      %s68 = sadd.s32 %s67, 1
      %p71 = scmp.eq.s32.totalorder %s12, 1
      %p72 = scmp.ne.s32.totalorder %s67, %s69
      %p73 = scmp.eq.s32.totalorder %s12, 0
      %p74 = por %p72, %p73
      %p75 = scmp.ne.s32.totalorder %s67, %s69
      %p76 = scmp.eq.s32.totalorder %s17, 1
      %p77 = por %p75, %p76
      %p78 = scmp.ne.s32.totalorder %s69, %s70
      %p79 = scmp.eq.s32.totalorder %s17, 0
      %p80 = por %p78, %p79
      %p81 = scmp.ne.s32.totalorder %s69, %s70
      %p82 = scmp.eq.s32.totalorder %s18, 1
      %p83 = por %p81, %p82
      %p85 = scmp.ne.s32.totalorder %s70, %s84
      %p86 = scmp.eq.s32.totalorder %s18, 0
      %p87 = por %p85, %p86
      %s88 = ssub.s32 %s12, %s19
      %p89 = scmp.eq.s32.totalorder %s88, 0
      %s91 = sadd.s32 %s90, 1
      %s92 = scalar_select %p89, %s90, %s91
      %p95 = pneg %p89
      %p96 = scmp.eq.s32.totalorder %s12, 1
      %p97 = por %p95, %p96
      %p98 = scmp.ne.s32.totalorder %s90, %s93
      %p99 = scmp.eq.s32.totalorder %s12, 0
      %p100 = por %p98, %p99
      %p101 = scmp.ne.s32.totalorder %s90, %s93
      %p102 = scmp.eq.s32.totalorder %s17, 1
      %p103 = por %p101, %p102
      %p104 = scmp.ne.s32.totalorder %s93, %s94
      %p105 = scmp.eq.s32.totalorder %s17, 0
      %p106 = por %p104, %p105
      %p107 = scmp.ne.s32.totalorder %s93, %s94
      %p108 = scmp.eq.s32.totalorder %s18, 1
      %p109 = por %p107, %p108
      %p111 = scmp.ne.s32.totalorder %s94, %s110
      %p112 = scmp.eq.s32.totalorder %s18, 0
      %p113 = por %p111, %p112
      %p114 = scmp.le.s32.totalorder 1, %s12
      %p115 = scmp.lt.s32.totalorder %s12, 3
      %p116 = pnand %p114, %p115
      %p117 = pneg %p116
      // Predicated region
      $region9: #{transformer_encoder_fwd.1} parent=5 // pred_check
        _
      $region10: #{transformer_encoder_fwd.1} parent=5 // pred_check_branch
        %119 = sbr.rel (%p116) target = $region12
      $region11: #{transformer_encoder_fwd.1} parent=5 // pred_region
        %s120 = ssub.s32 %s12, 1
        // Predicated region
        $region13: #{transformer_encoder_fwd.1} parent=11 // pred_check
          %p121 = pneg %p59
        $region14: #{transformer_encoder_fwd.1} parent=11 // pred_check_branch
          %123 = sbr.rel (%p121) target = $region16
        $region15: #{transformer_encoder_fwd.1} parent=11 // pred_region
          _
        $region16: #{transformer_encoder_fwd.1} parent=11 // pred_fallthru
          _
        // Predicated region
        $region17: #{transformer_encoder_fwd.1} parent=11 // pred_check
          %p124 = pneg %p80
        $region18: #{transformer_encoder_fwd.1} parent=11 // pred_check_branch
          %126 = sbr.rel (%p124) target = $region20
        $region19: #{transformer_encoder_fwd.1} parent=11 // pred_region
          _
        $region20: #{transformer_encoder_fwd.1} parent=11 // pred_fallthru
          _
      $region12: #{transformer_encoder_fwd.1} parent=5 // pred_fallthru
        _
      %p127 = scmp.lt.s32.totalorder %s12, 2
      // Predicated region
      $region21: #{transformer_encoder_fwd.1} parent=5 // pred_check
        %p128 = pneg %p127
      $region22: #{transformer_encoder_fwd.1} parent=5 // pred_check_branch
        %130 = sbr.rel (%p128) target = $region24
      $region23: #{transformer_encoder_fwd.1} parent=5 // pred_region
        // Predicated region
        $region25: #{transformer_encoder_fwd.1} parent=23 // pred_check
          %p131 = pneg %p32
        $region26: #{transformer_encoder_fwd.1} parent=23 // pred_check_branch
          %133 = sbr.rel (%p131) target = $region28
        $region27: #{transformer_encoder_fwd.1} parent=23 // pred_region
          %p134 = scmp.lt.s32.totalorder %s12, 1
          %s135 = scalar_select %p134, %s12, 1
          %s136 = smul.addr %s135, 8
          %s137 = scalar_lea.vmem %s0, %s136
        $region28: #{transformer_encoder_fwd.1} parent=23 // pred_fallthru
          _
      $region24: #{transformer_encoder_fwd.1} parent=5 // pred_fallthru
        _
      %p138 = scmp.le.s32.totalorder 1, %s12
      %p139 = scmp.lt.s32.totalorder %s12, 3
      %p140 = pnand %p138, %p139
      %p141 = pneg %p140
      // Predicated region
      $region29: #{transformer_encoder_fwd.1} parent=5 // pred_check
        _
      $region30: #{transformer_encoder_fwd.1} parent=5 // pred_check_branch
        %143 = sbr.rel (%p140) target = $region32
      $region31: #{transformer_encoder_fwd.1} parent=5 // pred_region
        %s144 = ssub.s32 %s12, 1
        %p145 = scmp.lt.s32.totalorder %s17, 1
        %s146 = scalar_select %p145, %s17, 1
        %s147 = smul.addr %s146, 8
        %s148 = scalar_lea.vmem %s0, %s147
        %p149 = pneg %p38
        %p150 = pneg %p35
        %p151 = pneg %p59
        %p152 = pneg %p56
        %p153 = pneg %p80
        %p154 = pneg %p77
        %p155 = pneg %p106
        %p156 = pneg %p103
        %s157 = sand.u32 %s93, 1
        %s158 = scalar_lea.sflag [#allocation3], %s157
        %s159 = sand.u32 %s93, 1
        %s160 = smul.addr %s159, 8
        %s161 = scalar_lea.vmem [#allocation2], %s160
        %p162 = scmp.lt.s32.totalorder %s17, 1
        %s163 = scalar_select %p162, %s17, 1
        %s164 = smul.addr %s163, 8
        %s165 = scalar_lea.vmem %s0, %s164
        %v167 = vld [vmem:[%s165] sm:$0xff]
        %v168 = vld [vmem:[%s1] sm:$0xf]
        %v169 = vld [vmem:[%s1 + $0x4] sm:$0xf]
        %v170 = vld [vmem:[%s1 + $0x8] sm:$0xf]
        %v171 = vld [vmem:[%s1 + $0xc] sm:$0xf]
        %v172 = vld [vmem:[%s1 + $0x10] sm:$0xf]
        %v173 = vld [vmem:[%s1 + $0x14] sm:$0xf]
        %v174 = vld [vmem:[%s1 + $0x18] sm:$0xf]
        %v175 = vld [vmem:[%s1 + $0x1c] sm:$0xf]
        %v176 = vld [vmem:[%s1 + $0x20] sm:$0xf]
        %v177 = vld [vmem:[%s1 + $0x24] sm:$0xf]
        %v178 = vld [vmem:[%s1 + $0x28] sm:$0xf]
        %v179 = vld [vmem:[%s1 + $0x2c] sm:$0xf]
        %v180 = vld [vmem:[%s2] sm:$0x1]
        %v181 = vld [vmem:[%s2 + $0x1] sm:$0x1]
        %v182 = vld [vmem:[%s2 + $0x2] sm:$0x1]
        %v183 = vld [vmem:[%s2 + $0x3] sm:$0x1]
        %v184 = vld [vmem:[%s2 + $0x4] sm:$0x1]
        %v185 = vld [vmem:[%s2 + $0x5] sm:$0x1]
        %v186 = vmul.f32 %v167, 2.0
        %vm187 = vcmask 261120
        %v188 = vsel %vm187, %v186, 0.0
        %189 = vadd.xlane.f32.xlu0 %v188
        %v190 = vpop.xlane.xlu0 %189
        %v191 = vrcp.pop 32.0
        %v192 = vmul.f32 %v190, %v191
        %v193 = vsub.f32 %v186, %v192
        %v194 = vmul.f32 %v193, %v193
        %v195 = vsel %vm187, %v194, 0.0
        %196 = vadd.xlane.f32.xlu0 %v195
        %v197 = vpop.xlane.xlu0 %196
        %v198 = vmul.f32 %v197, %v191
        %v199 = vadd.f32 %v198, 1e-05
        %v200 = vrsqrt.pop %v199
        %v201 = vmul.f32 %v193, %v200
        %v202 = vlaneseq
        %v203 = vshrl.u32 %v202, 7
        %v204 = vsub.s32 0, %v203
        %v205 = vrot.slane %v180, %v204
        %v206 = vmul.f32 %v201, %v205
        %v207 = vlaneseq
        %v208 = vshrl.u32 %v207, 7
        %v209 = vsub.s32 0, %v208
        %v210 = vrot.slane %v181, %v209
        %v211 = vadd.f32 %v206, %v210
        %v212 = vpack.c.bf16 %v211, %v211
        %v213 = vlaneseq
        %v214 = vshrl.u32 %v213, 7
        %v215 = vsub.s32 0, %v214
        %v216 = vrot.slane %v182, %v215
        %v221 = vunpack.c.l.b16 %v168
        %v222 = vunpack.c.l.b16 %v169
        %v223 = vunpack.c.l.b16 %v170
        %v224 = vunpack.c.l.b16 %v171
        %v225 = vpack.c.b16 %v222, %v221
        %v226 = vpack.c.b16 %v224, %v223
        %v230 = vsel %vm187, %v212, 0
        %232 = vmatprep.subr.bf16.mxu0 0
        %233 = vmatpush1.bf16.msra.mxu0 %v225
        %234 = vmatprep.subr.bf16.mxu0 0
        %235 = vmatpush1.bf16.msra.mxu0 %v226
        %236 = vmatprep.subr.bf16.mxu0 0
        %237 = vmatpush1.bf16.msra.mxu0 0
        %238 = vmatprep.subr.bf16.mxu0 0
        %239 = vmatpush1.bf16.msra.mxu0 0
        %240 = vmatprep.subr.bf16.mxu0 0
        %241 = vmatpush1.bf16.msra.mxu0 0
        %242 = vmatprep.subr.bf16.mxu0 0
        %243 = vmatpush1.bf16.msra.mxu0 0
        %244 = vmatprep.subr.bf16.mxu0 0
        %245 = vmatpush1.bf16.msra.mxu0 0
        %246 = vmatprep.subr.bf16.mxu0 0
        %247 = vmatpush1.bf16.msra.mxu0 0
        %248 = vmatprep.subr.bf16.mxu0 0
        %249 = vmatpush1.bf16.msra.mxu0 0
        %250 = vmatprep.subr.bf16.mxu0 0
        %251 = vmatpush1.bf16.msra.mxu0 0
        %252 = vmatprep.subr.bf16.mxu0 0
        %253 = vmatpush1.bf16.msra.mxu0 0
        %254 = vmatprep.subr.bf16.mxu0 0
        %255 = vmatpush1.bf16.msra.mxu0 0
        %256 = vmatprep.subr.bf16.mxu0 0
        %257 = vmatpush1.bf16.msra.mxu0 0
        %258 = vmatprep.subr.bf16.mxu0 0
        %259 = vmatpush1.bf16.msra.mxu0 0
        %260 = vmatprep.subr.bf16.mxu0 0
        %261 = vmatpush1.bf16.msra.mxu0 0
        %262 = vmatprep.subr.bf16.mxu0 0
        %263 = vmatpush1.bf16.msra.mxu0 0
        %264 = vmatprep.mubr.bf16.mxu0 0
        %265 = vmatmul.mubr.bf16.gmra.mrb[0].mxu0 %v230
        %v266 = vpop.f32.mrb[0].mxu0
        %v267 = vadd.f32 %v216, %v266
        %v268 = vpop.f32.mrb[0].mxu0
        %v269 = vpop.f32.mrb[0].mxu0
        %v270 = vpop.f32.mrb[0].mxu0
        %271 = vdwg.mxu0
        %v272 = vmul.f32 %v267, 0.5
        %v273 = vmul.f32 %v267, 0.044715
        %v274 = vmul.f32 %v273, %v267
        %v275 = vmul.f32 %v274, %v267
        %v276 = vadd.f32 %v267, %v275
        %v277 = vmul.f32 %v276, 0.7978846
        %v278 = vtanh.pop %v277
        %v279 = vadd.f32 %v278, 1.0
        %v280 = vmul.f32 %v272, %v279
        %v281 = vpack.c.bf16 %v280, %v280
        %v282 = vlaneseq
        %v283 = vshrl.u32 %v282, 7
        %v284 = vsub.s32 0, %v283
        %v285 = vrot.slane %v183, %v284
        %v294 = vunpack.c.l.b16 %v172
        %v295 = vunpack.c.l.b16 %v173
        %v296 = vunpack.c.l.b16 %v174
        %v297 = vunpack.c.l.b16 %v175
        %v298 = vunpack.c.l.b16 %v176
        %v299 = vunpack.c.l.b16 %v177
        %v300 = vunpack.c.l.b16 %v178
        %v301 = vunpack.c.l.b16 %v179
        %v302 = vpack.c.b16 %v295, %v294
        %v303 = vpack.c.b16 %v297, %v296
        %v304 = vpack.c.b16 %v299, %v298
        %v305 = vpack.c.b16 %v301, %v300
        %vm310 = vcmask 523264
        %v312 = vsel %vm310, %v281, 0
        %314 = vmatprep.subr.bf16.mxu0 0
        %315 = vmatpush1.bf16.msra.mxu0 %v302
        %316 = vmatprep.subr.bf16.mxu0 0
        %317 = vmatpush1.bf16.msra.mxu0 %v303
        %318 = vmatprep.subr.bf16.mxu0 0
        %319 = vmatpush1.bf16.msra.mxu0 %v304
        %320 = vmatprep.subr.bf16.mxu0 0
        %321 = vmatpush1.bf16.msra.mxu0 %v305
        %322 = vmatprep.subr.bf16.mxu0 0
        %323 = vmatpush1.bf16.msra.mxu0 0
        %324 = vmatprep.subr.bf16.mxu0 0
        %325 = vmatpush1.bf16.msra.mxu0 0
        %326 = vmatprep.subr.bf16.mxu0 0
        %327 = vmatpush1.bf16.msra.mxu0 0
        %328 = vmatprep.subr.bf16.mxu0 0
        %329 = vmatpush1.bf16.msra.mxu0 0
        %330 = vmatprep.subr.bf16.mxu0 0
        %331 = vmatpush1.bf16.msra.mxu0 0
        %332 = vmatprep.subr.bf16.mxu0 0
        %333 = vmatpush1.bf16.msra.mxu0 0
        %334 = vmatprep.subr.bf16.mxu0 0
        %335 = vmatpush1.bf16.msra.mxu0 0
        %336 = vmatprep.subr.bf16.mxu0 0
        %337 = vmatpush1.bf16.msra.mxu0 0
        %338 = vmatprep.subr.bf16.mxu0 0
        %339 = vmatpush1.bf16.msra.mxu0 0
        %340 = vmatprep.subr.bf16.mxu0 0
        %341 = vmatpush1.bf16.msra.mxu0 0
        %342 = vmatprep.subr.bf16.mxu0 0
        %343 = vmatpush1.bf16.msra.mxu0 0
        %344 = vmatprep.subr.bf16.mxu0 0
        %345 = vmatpush1.bf16.msra.mxu0 0
        %346 = vmatprep.mubr.bf16.mxu0 0
        %347 = vmatmul.mubr.bf16.gmra.mrb[0].mxu0 %v312
        %v348 = vpop.f32.mrb[0].mxu0
        %v349 = vadd.f32 %v285, %v348
        %v350 = vpop.f32.mrb[0].mxu0
        %v351 = vpop.f32.mrb[0].mxu0
        %v352 = vpop.f32.mrb[0].mxu0
        %353 = vdwg.mxu0
        %v354 = vadd.f32 %v349, %v167
        %v355 = vsel %vm187, %v354, 0.0
        %356 = vadd.xlane.f32.xlu0 %v355
        %v357 = vpop.xlane.xlu0 %356
        %v358 = vmul.f32 %v357, %v191
        %v359 = vsub.f32 %v354, %v358
        %v360 = vmul.f32 %v359, %v359
        %v361 = vsel %vm187, %v360, 0.0
        %362 = vadd.xlane.f32.xlu0 %v361
        %v363 = vpop.xlane.xlu0 %362
        %v364 = vmul.f32 %v363, %v191
        %v365 = vadd.f32 %v364, 1e-05
        %v366 = vrsqrt.pop %v365
        %v367 = vmul.f32 %v359, %v366
        %v368 = vlaneseq
        %v369 = vshrl.u32 %v368, 7
        %v370 = vsub.s32 0, %v369
        %v371 = vrot.slane %v184, %v370
        %v372 = vmul.f32 %v367, %v371
        %v373 = vlaneseq
        %v374 = vshrl.u32 %v373, 7
        %v375 = vsub.s32 0, %v374
        %v376 = vrot.slane %v185, %v375
        %v377 = vadd.f32 %v372, %v376
        %s378 = scalar_lea.vmem %s1, 48
        %v379 = vld [vmem:[%s378] sm:$0xf]
        %v380 = vld [vmem:[%s378 + $0x4] sm:$0xf]
        %v381 = vld [vmem:[%s378 + $0x8] sm:$0xf]
        %v382 = vld [vmem:[%s378 + $0xc] sm:$0xf]
        %v383 = vld [vmem:[%s378 + $0x10] sm:$0xf]
        %v384 = vld [vmem:[%s378 + $0x14] sm:$0xf]
        %v385 = vld [vmem:[%s378 + $0x18] sm:$0xf]
        %v386 = vld [vmem:[%s378 + $0x1c] sm:$0xf]
        %v387 = vld [vmem:[%s378 + $0x20] sm:$0xf]
        %v388 = vld [vmem:[%s378 + $0x24] sm:$0xf]
        %v389 = vld [vmem:[%s378 + $0x28] sm:$0xf]
        %v390 = vld [vmem:[%s378 + $0x2c] sm:$0xf]
        %s391 = scalar_lea.vmem %s2, 8
        %v392 = vld [vmem:[%s391] sm:$0x1]
        %v393 = vld [vmem:[%s391 + $0x1] sm:$0x1]
        %v394 = vld [vmem:[%s391 + $0x2] sm:$0x1]
        %v395 = vld [vmem:[%s391 + $0x3] sm:$0x1]
        %v396 = vld [vmem:[%s391 + $0x4] sm:$0x1]
        %v397 = vld [vmem:[%s391 + $0x5] sm:$0x1]
        %v398 = vmul.f32 %v377, 2.0
        %v399 = vsel %vm187, %v398, 0.0
        %400 = vadd.xlane.f32.xlu0 %v399
        %v401 = vpop.xlane.xlu0 %400
        %v402 = vmul.f32 %v401, %v191
        %v403 = vsub.f32 %v398, %v402
        %v404 = vmul.f32 %v403, %v403
        %v405 = vsel %vm187, %v404, 0.0
        %406 = vadd.xlane.f32.xlu0 %v405
        %v407 = vpop.xlane.xlu0 %406
        %v408 = vmul.f32 %v407, %v191
        %v409 = vadd.f32 %v408, 1e-05
        %v410 = vrsqrt.pop %v409
        %v411 = vmul.f32 %v403, %v410
        %v412 = vlaneseq
        %v413 = vshrl.u32 %v412, 7
        %v414 = vsub.s32 0, %v413
        %v415 = vrot.slane %v392, %v414
        %v416 = vmul.f32 %v411, %v415
        %v417 = vlaneseq
        %v418 = vshrl.u32 %v417, 7
        %v419 = vsub.s32 0, %v418
        %v420 = vrot.slane %v393, %v419
        %v421 = vadd.f32 %v416, %v420
        %v422 = vpack.c.bf16 %v421, %v421
        %v423 = vlaneseq
        %v424 = vshrl.u32 %v423, 7
        %v425 = vsub.s32 0, %v424
        %v426 = vrot.slane %v394, %v425
        %v431 = vunpack.c.l.b16 %v379
        %v432 = vunpack.c.l.b16 %v380
        %v433 = vunpack.c.l.b16 %v381
        %v434 = vunpack.c.l.b16 %v382
        %v435 = vpack.c.b16 %v432, %v431
        %v436 = vpack.c.b16 %v434, %v433
        %v440 = vsel %vm187, %v422, 0
        %442 = vmatprep.subr.bf16.mxu0 0
        %443 = vmatpush1.bf16.msra.mxu0 %v435
        %444 = vmatprep.subr.bf16.mxu0 0
        %445 = vmatpush1.bf16.msra.mxu0 %v436
        %446 = vmatprep.subr.bf16.mxu0 0
        %447 = vmatpush1.bf16.msra.mxu0 0
        %448 = vmatprep.subr.bf16.mxu0 0
        %449 = vmatpush1.bf16.msra.mxu0 0
        %450 = vmatprep.subr.bf16.mxu0 0
        %451 = vmatpush1.bf16.msra.mxu0 0
        %452 = vmatprep.subr.bf16.mxu0 0
        %453 = vmatpush1.bf16.msra.mxu0 0
        %454 = vmatprep.subr.bf16.mxu0 0
        %455 = vmatpush1.bf16.msra.mxu0 0
        %456 = vmatprep.subr.bf16.mxu0 0
        %457 = vmatpush1.bf16.msra.mxu0 0
        %458 = vmatprep.subr.bf16.mxu0 0
        %459 = vmatpush1.bf16.msra.mxu0 0
        %460 = vmatprep.subr.bf16.mxu0 0
        %461 = vmatpush1.bf16.msra.mxu0 0
        %462 = vmatprep.subr.bf16.mxu0 0
        %463 = vmatpush1.bf16.msra.mxu0 0
        %464 = vmatprep.subr.bf16.mxu0 0
        %465 = vmatpush1.bf16.msra.mxu0 0
        %466 = vmatprep.subr.bf16.mxu0 0
        %467 = vmatpush1.bf16.msra.mxu0 0
        %468 = vmatprep.subr.bf16.mxu0 0
        %469 = vmatpush1.bf16.msra.mxu0 0
        %470 = vmatprep.subr.bf16.mxu0 0
        %471 = vmatpush1.bf16.msra.mxu0 0
        %472 = vmatprep.subr.bf16.mxu0 0
        %473 = vmatpush1.bf16.msra.mxu0 0
        %474 = vmatprep.mubr.bf16.mxu0 0
        %475 = vmatmul.mubr.bf16.gmra.mrb[0].mxu0 %v440
        %v476 = vpop.f32.mrb[0].mxu0
        %v477 = vadd.f32 %v426, %v476
        %v478 = vpop.f32.mrb[0].mxu0
        %v479 = vpop.f32.mrb[0].mxu0
        %v480 = vpop.f32.mrb[0].mxu0
        %481 = vdwg.mxu0
        %v482 = vmul.f32 %v477, 0.5
        %v483 = vmul.f32 %v477, 0.044715
        %v484 = vmul.f32 %v483, %v477
        %v485 = vmul.f32 %v484, %v477
        %v486 = vadd.f32 %v477, %v485
        %v487 = vmul.f32 %v486, 0.7978846
        %v488 = vtanh.pop %v487
        %v489 = vadd.f32 %v488, 1.0
        %v490 = vmul.f32 %v482, %v489
        %v491 = vpack.c.bf16 %v490, %v490
        %v492 = vlaneseq
        %v493 = vshrl.u32 %v492, 7
        %v494 = vsub.s32 0, %v493
        %v495 = vrot.slane %v395, %v494
        %v504 = vunpack.c.l.b16 %v383
        %v505 = vunpack.c.l.b16 %v384
        %v506 = vunpack.c.l.b16 %v385
        %v507 = vunpack.c.l.b16 %v386
        %v508 = vunpack.c.l.b16 %v387
        %v509 = vunpack.c.l.b16 %v388
        %v510 = vunpack.c.l.b16 %v389
        %v511 = vunpack.c.l.b16 %v390
        %v512 = vpack.c.b16 %v505, %v504
        %v513 = vpack.c.b16 %v507, %v506
        %v514 = vpack.c.b16 %v509, %v508
        %v515 = vpack.c.b16 %v511, %v510
        %v521 = vsel %vm310, %v491, 0
        %523 = vmatprep.subr.bf16.mxu0 0
        %524 = vmatpush1.bf16.msra.mxu0 %v512
        %525 = vmatprep.subr.bf16.mxu0 0
        %526 = vmatpush1.bf16.msra.mxu0 %v513
        %527 = vmatprep.subr.bf16.mxu0 0
        %528 = vmatpush1.bf16.msra.mxu0 %v514
        %529 = vmatprep.subr.bf16.mxu0 0
        %530 = vmatpush1.bf16.msra.mxu0 %v515
        %531 = vmatprep.subr.bf16.mxu0 0
        %532 = vmatpush1.bf16.msra.mxu0 0
        %533 = vmatprep.subr.bf16.mxu0 0
        %534 = vmatpush1.bf16.msra.mxu0 0
        %535 = vmatprep.subr.bf16.mxu0 0
        %536 = vmatpush1.bf16.msra.mxu0 0
        %537 = vmatprep.subr.bf16.mxu0 0
        %538 = vmatpush1.bf16.msra.mxu0 0
        %539 = vmatprep.subr.bf16.mxu0 0
        %540 = vmatpush1.bf16.msra.mxu0 0
        %541 = vmatprep.subr.bf16.mxu0 0
        %542 = vmatpush1.bf16.msra.mxu0 0
        %543 = vmatprep.subr.bf16.mxu0 0
        %544 = vmatpush1.bf16.msra.mxu0 0
        %545 = vmatprep.subr.bf16.mxu0 0
        %546 = vmatpush1.bf16.msra.mxu0 0
        %547 = vmatprep.subr.bf16.mxu0 0
        %548 = vmatpush1.bf16.msra.mxu0 0
        %549 = vmatprep.subr.bf16.mxu0 0
        %550 = vmatpush1.bf16.msra.mxu0 0
        %551 = vmatprep.subr.bf16.mxu0 0
        %552 = vmatpush1.bf16.msra.mxu0 0
        %553 = vmatprep.subr.bf16.mxu0 0
        %554 = vmatpush1.bf16.msra.mxu0 0
        %555 = vmatprep.mubr.bf16.mxu0 0
        %556 = vmatmul.mubr.bf16.gmra.mrb[0].mxu0 %v521
        %v557 = vpop.f32.mrb[0].mxu0
        %v558 = vadd.f32 %v495, %v557
        %v559 = vpop.f32.mrb[0].mxu0
        %v560 = vpop.f32.mrb[0].mxu0
        %v561 = vpop.f32.mrb[0].mxu0
        %562 = vdwg.mxu0
        %v563 = vadd.f32 %v558, %v377
        %v564 = vsel %vm187, %v563, 0.0
        %565 = vadd.xlane.f32.xlu0 %v564
        %v566 = vpop.xlane.xlu0 %565
        %v567 = vmul.f32 %v566, %v191
        %v568 = vsub.f32 %v563, %v567
        %v569 = vmul.f32 %v568, %v568
        %v570 = vsel %vm187, %v569, 0.0
        %571 = vadd.xlane.f32.xlu0 %v570
        %v572 = vpop.xlane.xlu0 %571
        %v573 = vmul.f32 %v572, %v191
        %v574 = vadd.f32 %v573, 1e-05
        %v575 = vrsqrt.pop %v574
        %v576 = vmul.f32 %v568, %v575
        %v577 = vlaneseq
        %v578 = vshrl.u32 %v577, 7
        %v579 = vsub.s32 0, %v578
        %v580 = vrot.slane %v396, %v579
        %v581 = vmul.f32 %v576, %v580
        %v582 = vlaneseq
        %v583 = vshrl.u32 %v582, 7
        %v584 = vsub.s32 0, %v583
        %v585 = vrot.slane %v397, %v584
        %v586 = vadd.f32 %v581, %v585
        %587 = vst.msk [vmem:[%s161] sm:$0xff] %vm187, %v586
        %s588 = sand.u32 %s93, 1
        %s589 = scalar_lea.sflag [#allocation3], %s588
        %s590 = sand.u32 %s93, 1
        %s591 = smul.addr %s590, 8
        %s592 = scalar_lea.vmem [#allocation2], %s591
        // Predicated region
        $region33: #{transformer_encoder_fwd.1} parent=31 // pred_check
          %p593 = pneg %p103
        $region34: #{transformer_encoder_fwd.1} parent=31 // pred_check_branch
          %595 = sbr.rel (%p593) target = $region36
        $region35: #{transformer_encoder_fwd.1} parent=31 // pred_region
          %s597 = ssub.s32 128, 128
          %598 = vsyncadd %s589, %s597
          %s599 = smul.addr %s17, 128
          %s600 = scalar_lea.hbm %s3, %s599
          %s602 = sshll.u32 %s592, 4
          %s603 = int_to_ptr.vmem [resolvable:$true] %s602
          %605 = dma.vmem_to_hbm [thread:$0]  %s603, 128, %s600, %s589
        $region36: #{transformer_encoder_fwd.1} parent=31 // pred_fallthru
          _
      $region32: #{transformer_encoder_fwd.1} parent=5 // pred_fallthru
        _
      %p606 = scmp.le.s32.totalorder 2, %s12
      // Predicated region
      $region37: #{transformer_encoder_fwd.1} parent=5 // pred_check
        %p607 = pneg %p606
      $region38: #{transformer_encoder_fwd.1} parent=5 // pred_check_branch
        %609 = sbr.rel (%p607) target = $region40
      $region39: #{transformer_encoder_fwd.1} parent=5 // pred_region
        %s610 = ssub.s32 %s12, 2
        // Predicated region
        $region41: #{transformer_encoder_fwd.1} parent=39 // pred_check
          %p611 = pneg %p109
        $region42: #{transformer_encoder_fwd.1} parent=39 // pred_check_branch
          %613 = sbr.rel (%p611) target = $region44
        $region43: #{transformer_encoder_fwd.1} parent=39 // pred_region
          %s614 = sand.u32 %s94, 1
          %s615 = scalar_lea.sflag [#allocation3], %s614
          %s616 = sand.u32 %s94, 1
          %s617 = smul.addr %s616, 8
          %s618 = scalar_lea.vmem [#allocation2], %s617
          %619 = dma.done %s615, 128
        $region44: #{transformer_encoder_fwd.1} parent=39 // pred_fallthru
          _
      $region40: #{transformer_encoder_fwd.1} parent=5 // pred_fallthru
        _
    $region6: #{transformer_encoder_fwd.1} parent=1 // loop_footer
      %s16 = sadd.s32 1, %s12
    $region7: #{transformer_encoder_fwd.1} parent=1 // loop_footer_branch
      %11 = sbr.rel target = $region3
    $region8: #{transformer_encoder_fwd.1} parent=1 // loop_exit
      _
    %620 = vsyncpa [#allocation3], 1
    %s621 = scalar_lea.sflag [#allocation3], 1
    %622 = vsyncpa %s621, 1

</llo_original>
